<compile_context>
chip_gen: v5e
topology: v5e:2x2
jax: 0.10.0
libtpu: 0.0.40
codegen_flags: <defaults>
</compile_context>

<pallas_src>
import jax
import jax.numpy as jnp
from jax.experimental import pallas as pl
from jax.experimental.pallas import tpu as pltpu


def bond_float_rbf_kernel(x_ref, centers_ref, neg_gamma_ref, w_ref, o_ref):
    # x_ref:         (1, TN)      bond lengths, bonds on the lane axis
    # centers_ref:   (C+1, 1)     RBF centers (last row is the bias row, value 0)
    # neg_gamma_ref: (C+1, 1)     -gamma per row; 0 in the last row -> rbf row == 1
    # w_ref:         (E, C+1)     [Linear weight | bias]   (resident across grid)
    # o_ref:         (E, TN)      lane-dense output tile
    d = x_ref[...] - centers_ref[...]             # (C+1, TN) lane/sublane broadcast
    rbf = jnp.exp(neg_gamma_ref[...] * d * d)     # (C+1, TN); last row == 1.0 (bias)
    o_ref[...] = jnp.dot(w_ref[...], rbf, preferred_element_type=jnp.float32)


def _round_up(v, m):
    return ((v + m - 1) // m) * m


def bond_float_rbf(bond_float_features, centers, gamma, weight, bias, *,
                   tn_max=8192, return_transposed=False):
    """bond_float_features: (N, n_feat); column 0 ('bond_length') is used.

    Returns (N, embed_dim) to match the PyTorch module, or the kernel's native
    lane-dense (embed_dim, N) when return_transposed=True (for fused consumers).
    """
    feats = bond_float_features.astype(jnp.float32)
    n, n_feat = feats.shape
    embed_dim, n_centers = weight.shape
    c_aug = n_centers + 1

    # Only the bond_length column goes to the kernel.  For n_feat == 1 the
    # reshape (N, 1) -> (1, N) is a free contiguous reshape; otherwise slice
    # the single used column (tiny: 4 B/row).
    if n_feat == 1:
        x_row = feats.reshape(1, n)
    else:
        x_row = feats[:, 0].reshape(1, n)

    # Lane tile: multiple of 128.  Small N -> one big step (per-step overhead
    # dominates); N > 512 -> aim for >=4 grid steps so the "parallel" axis can
    # shard across v7x's two TensorCores and the DMAs pipeline.  tn_max keeps
    # the double-buffered VMEM footprint a few MiB on all generations.
    if n <= 512:
        tn = _round_up(max(n, 1), 128)
    else:
        tn = min(_round_up(pl.cdiv(n, 4), 128), tn_max)
    tn = max(tn, 128)
    grid = (pl.cdiv(n, tn),)

    # Augmented parameters: row C is a fake center with gamma = 0, so its RBF
    # value is exp(0) == 1 and W_aug's last column folds the bias into the MXU.
    gamma_scalar = gamma.reshape(()).astype(jnp.float32)
    centers_col = jnp.concatenate(
        [centers.astype(jnp.float32).reshape(-1, 1),
         jnp.zeros((1, 1), jnp.float32)], axis=0)                       # (C+1, 1)
    neg_gamma_col = jnp.concatenate(
        [(-gamma_scalar) * jnp.ones((n_centers, 1), jnp.float32),
         jnp.zeros((1, 1), jnp.float32)], axis=0)                       # (C+1, 1)
    w_aug = jnp.concatenate(
        [weight.astype(jnp.float32),
         bias.astype(jnp.float32).reshape(-1, 1)], axis=1)              # (E, C+1)

    cost = pl.CostEstimate(
        flops=2 * n * c_aug * embed_dim,
        transcendentals=n * c_aug,
        bytes_accessed=4 * (n + n * embed_dim + embed_dim * c_aug + 2 * c_aug),
    )

    out_t = pl.pallas_call(
        bond_float_rbf_kernel,
        out_shape=jax.ShapeDtypeStruct((embed_dim, n), jnp.float32),
        grid=grid,
        in_specs=[
            # bond lengths, tiled along the lane axis; partial last block masked.
            pl.BlockSpec((1, tn), lambda i: (0, i)),
            # Small params: constant index_map -> resident across grid steps.
            pl.BlockSpec((c_aug, 1), lambda i: (0, 0)),
            pl.BlockSpec((c_aug, 1), lambda i: (0, 0)),
            pl.BlockSpec((embed_dim, c_aug), lambda i: (0, 0)),
        ],
        out_specs=pl.BlockSpec((embed_dim, tn), lambda i: (0, i)),
        compiler_params=pltpu.CompilerParams(
            dimension_semantics=("parallel",)),
        cost_estimate=cost,
    )(x_row, centers_col, neg_gamma_col, w_aug)

    if return_transposed:
        return out_t          # (E, N) lane-dense, for fused downstream consumers
    return out_t.T            # (N, E), matching the PyTorch module


def reference(bond_float_features, centers, gamma, weight, bias):
    x = bond_float_features[:, 0].reshape(-1, 1).astype(jnp.float32)
    rbf = jnp.exp(-gamma[0] * jnp.square(x - centers.reshape(1, -1)))
    return rbf @ weight.T + bias


if __name__ == "__main__":
    key = jax.random.PRNGKey(0)
    k_x, k_w, k_b, k_x2 = jax.random.split(key, 4)

    # Module __init__ parameters (bond_float_names = ['bond_length']):
    centers = jnp.arange(0.0, 2.0, 0.1, dtype=jnp.float32)   # 20 centers
    gamma = jnp.array([10.0], dtype=jnp.float32)
    n_centers = centers.shape[0]
    embed_dim = 32

    # Deterministic Linear(n_centers, embed_dim) init (PyTorch-style uniform bound).
    bound = 1.0 / jnp.sqrt(jnp.float32(n_centers))
    weight = jax.random.uniform(k_w, (embed_dim, n_centers), jnp.float32, -bound, bound)
    bias = jax.random.uniform(k_b, (embed_dim,), jnp.float32, -bound, bound)

    # Case 1: N=64 bonds, 1 float feature ('bond_length') per bond.
    n_bonds = 64
    feats = jax.random.uniform(k_x, (n_bonds, 1), jnp.float32, 0.0, 2.0)
    out = bond_float_rbf(feats, centers, gamma, weight, bias)
    jax.block_until_ready(out)
    ref = reference(feats, centers, gamma, weight, bias)
    assert out.shape == (n_bonds, embed_dim)
    assert jnp.allclose(out, ref, atol=2e-5, rtol=2e-5)

    # Case 2: N not a multiple of the lane tile exercises the masked-tail path;
    # also exercise the lane-dense (E, N) form used by fused consumers.
    n_bonds2 = 50
    feats2 = jax.random.uniform(k_x2, (n_bonds2, 1), jnp.float32, 0.0, 2.0)
    out2_t = bond_float_rbf(feats2, centers, gamma, weight, bias,
                            return_transposed=True)
    jax.block_until_ready(out2_t)
    ref2 = reference(feats2, centers, gamma, weight, bias)
    assert out2_t.shape == (embed_dim, n_bonds2)
    assert jnp.allclose(out2_t.T, ref2, atol=2e-5, rtol=2e-5)

    print("KERNEL_OK")
</pallas_src>

<mosaic_0001>
module attributes {stable_mosaic.version = 11 : i64} {
  func.func @bond_float_rbf_kernel(%arg0: i32, %arg1: memref<1x128xf32, #tpu.memory_space<vmem>>, %arg2: memref<21x1xf32, #tpu.memory_space<vmem>>, %arg3: memref<21x1xf32, #tpu.memory_space<vmem>>, %arg4: memref<32x21xf32, #tpu.memory_space<vmem>>, %arg5: memref<32x128xf32, #tpu.memory_space<vmem>>) attributes {dimension_semantics = [#tpu.dimension_semantics<parallel>], iteration_bounds = array<i64: 1>, scalar_prefetch = 0 : i64, scratch_operands = 0 : i64, tpu.core_type = #tpu.core_type<tc>, window_params = [{transform_indices = @transform_0, window_bounds = array<i64: 1, 128>}, {pipeline_mode = #tpu.pipeline_mode<synchronous>, transform_indices = @transform_1, window_bounds = array<i64: 21, 1>}, {pipeline_mode = #tpu.pipeline_mode<synchronous>, transform_indices = @transform_2, window_bounds = array<i64: 21, 1>}, {pipeline_mode = #tpu.pipeline_mode<synchronous>, transform_indices = @transform_3, window_bounds = array<i64: 32, 21>}, {transform_indices = @transform_4, window_bounds = array<i64: 32, 128>}]} {
    %c0 = arith.constant 0 : index
    %c0_0 = arith.constant 0 : index
    %0 = vector.load %arg1[%c0, %c0_0] : memref<1x128xf32, #tpu.memory_space<vmem>>, vector<1x128xf32>
    %c0_1 = arith.constant 0 : index
    %c0_2 = arith.constant 0 : index
    %1 = vector.load %arg2[%c0_1, %c0_2] : memref<21x1xf32, #tpu.memory_space<vmem>>, vector<21x1xf32>
    %2 = vector.broadcast %0 : vector<1x128xf32> to vector<21x128xf32>
    %3 = vector.broadcast %1 : vector<21x1xf32> to vector<21x128xf32>
    %4 = arith.subf %2, %3 : vector<21x128xf32>
    %c0_3 = arith.constant 0 : index
    %c0_4 = arith.constant 0 : index
    %5 = vector.load %arg3[%c0_3, %c0_4] : memref<21x1xf32, #tpu.memory_space<vmem>>, vector<21x1xf32>
    %6 = vector.broadcast %5 : vector<21x1xf32> to vector<21x128xf32>
    %7 = arith.mulf %6, %4 : vector<21x128xf32>
    %8 = arith.mulf %7, %4 : vector<21x128xf32>
    %9 = math.exp %8 : vector<21x128xf32>
    %c0_5 = arith.constant 0 : index
    %c0_6 = arith.constant 0 : index
    %10 = vector.load %arg4[%c0_5, %c0_6] : memref<32x21xf32, #tpu.memory_space<vmem>>, vector<32x21xf32>
    %cst = arith.constant dense<0.000000e+00> : vector<32x128xf32>
    %11 = tpu.matmul %10, %9, %cst {dimension_numbers = #tpu.dot_dimension_numbers<[1], [0], [0], [1], [0, 0, 1, 1], [], []>} : vector<32x21xf32>, vector<21x128xf32>, vector<32x128xf32> -> vector<32x128xf32>
    %c0_7 = arith.constant 0 : index
    %c0_8 = arith.constant 0 : index
    %12 = vector.load %arg5[%c0_7, %c0_8] : memref<32x128xf32, #tpu.memory_space<vmem>>, vector<32x128xf32>
    tpu.vector_store %arg5[%c0_7, %c0_8], %11 {strides = array<i32>} : memref<32x128xf32, #tpu.memory_space<vmem>>, vector<32x128xf32>,
    return
  }
  func.func @transform_0(%arg0: i32) -> (i32, i32) {
    %c0_i32 = arith.constant 0 : i32
    %c0_i32_0 = arith.constant 0 : i32
    return %c0_i32, %arg0 : i32, i32
  }
  func.func @transform_1(%arg0: i32) -> (i32, i32) {
    %c0_i32 = arith.constant 0 : i32
    %c0_i32_0 = arith.constant 0 : i32
    %c0_i32_1 = arith.constant 0 : i32
    return %c0_i32, %c0_i32_0 : i32, i32
  }
  func.func @transform_2(%arg0: i32) -> (i32, i32) {
    %c0_i32 = arith.constant 0 : i32
    %c0_i32_0 = arith.constant 0 : i32
    %c0_i32_1 = arith.constant 0 : i32
    return %c0_i32, %c0_i32_0 : i32, i32
  }
  func.func @transform_3(%arg0: i32) -> (i32, i32) {
    %c0_i32 = arith.constant 0 : i32
    %c0_i32_0 = arith.constant 0 : i32
    %c0_i32_1 = arith.constant 0 : i32
    return %c0_i32, %c0_i32_0 : i32, i32
  }
  func.func @transform_4(%arg0: i32) -> (i32, i32) {
    %c0_i32 = arith.constant 0 : i32
    %c0_i32_0 = arith.constant 0 : i32
    return %c0_i32, %arg0 : i32, i32
  }
}

</mosaic_0001>

<llo_original>
// kernel: tpu_custom_call.1
$region0: #{tpu_custom_call.1}
  #allocation0 [shape = 'u32[]', space=smem, size = 0x4, offset = 0x4, fixed_abs, tag = 'smem constant byte address 0x4 - core index']
  #allocation1 [shape = 'u32[72,128]{1,0:T(1,128)}', space=vmem, size = 0x9000, scoped, tag = 'internal scratch']
  %s0 = inlined_call_operand.vmem [shape: f32[1,64], index: 0, kind: input, shape index: {}]
  %s1 = inlined_call_operand.vmem [shape: f32[21,1], index: 1, kind: input, shape index: {}]
  %s2 = inlined_call_operand.vmem [shape: f32[21,1], index: 2, kind: input, shape index: {}]
  %s3 = inlined_call_operand.vmem [shape: f32[32,21], index: 3, kind: input, shape index: {}]
  %s4 = inlined_call_operand.hbm [shape: f32[32,64], index: 4, kind: output, shape index: {}]
  %s5 = sld [smem:[#allocation0]]
  $region26: #{tpu_custom_call.1} parent=0
    _
  %s7 = ssub.s32 1, %s5
  %s8 = scalar_select 0, %s7, %s5
  $region1: #{tpu_custom_call.1} parent=0
    #allocation2 [shape = 'u8[16384]{0}', space=vmem, size = 0x4000, scoped, tag = 'output window, operand 0, single buffered']
    #allocation3 [shape = 's32[1]{0}', space=sflag, size = 0x4, scoped, tag = 'scoped memory for tpu_custom_call.1']
    %9 = vsyncpa [#allocation3], 0
    // Predicated region
    $region2: #{tpu_custom_call.1} parent=1 // pred_check
      _
    $region3: #{tpu_custom_call.1} parent=1 // pred_check_branch
      %11 = sbr.rel (0) target = $region5
    $region4: #{tpu_custom_call.1} parent=1 // pred_region
      _
    $region5: #{tpu_custom_call.1} parent=1 // pred_fallthru
      _
    // Predicated region
    $region6: #{tpu_custom_call.1} parent=1 // pred_check
      _
    $region7: #{tpu_custom_call.1} parent=1 // pred_check_branch
      %13 = sbr.rel (0) target = $region9
    $region8: #{tpu_custom_call.1} parent=1 // pred_region
      _
    $region9: #{tpu_custom_call.1} parent=1 // pred_fallthru
      _
    // Predicated region
    $region10: #{tpu_custom_call.1} parent=1 // pred_check
      _
    $region11: #{tpu_custom_call.1} parent=1 // pred_check_branch
      %15 = sbr.rel (0) target = $region13
    $region12: #{tpu_custom_call.1} parent=1 // pred_region
      _
    $region13: #{tpu_custom_call.1} parent=1 // pred_fallthru
      _
    // Predicated region
    $region14: #{tpu_custom_call.1} parent=1 // pred_check
      _
    $region15: #{tpu_custom_call.1} parent=1 // pred_check_branch
      %17 = sbr.rel (0) target = $region17
    $region16: #{tpu_custom_call.1} parent=1 // pred_region
      _
    $region17: #{tpu_custom_call.1} parent=1 // pred_fallthru
      _
    %v18 = vld [vmem:[%s0] sm:$0x1]
    %v19 = vld [vmem:[%s1] sm:$0xff]
    %v20 = vld [vmem:[%s1 + $0x8] sm:$0xff]
    %v21 = vld [vmem:[%s1 + $0x10] sm:$0x1f]
    %v23 = vperm.slane %v18, 0
    %26 = vset.pattern.permute.xlu0 0
    %27 = vperm.xlu0 %26, %v19
    %v28 = vpop.permute.xlu0 %27
    %31 = vset.pattern.permute.xlu0 0
    %32 = vperm.xlu0 %31, %v20
    %v33 = vpop.permute.xlu0 %32
    %36 = vset.pattern.permute.xlu0 0
    %37 = vperm.xlu0 %36, %v21
    %v38 = vpop.permute.xlu0 %37
    %v40 = vsub.f32 %v23, %v28
    %v41 = vsub.f32 %v23, %v33
    %v42 = vsub.f32 %v23, %v38
    %v43 = vld [vmem:[%s2] sm:$0xff]
    %v44 = vld [vmem:[%s2 + $0x8] sm:$0xff]
    %v45 = vld [vmem:[%s2 + $0x10] sm:$0x1f]
    %47 = vset.pattern.permute.xlu0 0
    %48 = vperm.xlu0 %47, %v43
    %v49 = vpop.permute.xlu0 %48
    %52 = vset.pattern.permute.xlu0 0
    %53 = vperm.xlu0 %52, %v44
    %v54 = vpop.permute.xlu0 %53
    %57 = vset.pattern.permute.xlu0 0
    %58 = vperm.xlu0 %57, %v45
    %v59 = vpop.permute.xlu0 %58
    %v61 = vmul.f32 %v49, %v40
    %v62 = vmul.f32 %v54, %v41
    %v63 = vmul.f32 %v59, %v42
    %v64 = vmul.f32 %v61, %v40
    %v65 = vmul.f32 %v62, %v41
    %v66 = vmul.f32 %v63, %v42
    %v67 = vmul.f32 %v64, 1.442695
    %v68 = vpow.pop %v67
    %v69 = vmul.f32 %v65, 1.442695
    %v70 = vpow.pop %v69
    %v71 = vmul.f32 %v66, 1.442695
    %v72 = vpow.pop %v71
    %v73 = vld [vmem:[%s3] sm:$0xff]
    %v74 = vld [vmem:[%s3 + $0x8] sm:$0xff]
    %v75 = vld [vmem:[%s3 + $0x10] sm:$0xff]
    %v76 = vld [vmem:[%s3 + $0x18] sm:$0xff]
    %vm77 = vcmask 171008
    %v79 = vsel %vm77, %v73, 0
    %v82 = vsel %vm77, %v74, 0
    %v85 = vsel %vm77, %v75, 0
    %v88 = vsel %vm77, %v76, 0
    %vm90 = vcmask 1044480
    %v92 = vsel %vm90, %v72, 0
    %94 = vmatpush.msra.mxu0 0.0
    %95 = vmatpush.msra.mxu0 0.0
    %96 = vmatpush.msra.mxu0 0.0
    %97 = vmatpush.msra.mxu0 0.0
    %98 = vmatpush.msra.mxu0 0.0
    %99 = vmatpush.msra.mxu0 0.0
    %100 = vmatpush.msra.mxu0 0.0
    %101 = vmatpush.msra.mxu0 0.0
    %102 = vmatpush.msra.mxu0 0.0
    %103 = vmatpush.msra.mxu0 0.0
    %104 = vmatpush.msra.mxu0 0.0
    %105 = vmatpush.msra.mxu0 0.0
    %106 = vmatpush.msra.mxu0 0.0
    %107 = vmatpush.msra.mxu0 %v92
    %108 = vmatpush.msra.mxu0 %v70
    %109 = vmatpush.msra.mxu0 %v68
    %110 = vmatmul.f32.gmra.mxu0 %v79
    %v111 = vpop.f32.mrf.mxu0
    %v112 = vadd.f32 0.0, %v111
    %113 = vmatmul.f32.gmra.mxu0 %v82
    %v114 = vpop.f32.mrf.mxu0
    %v115 = vadd.f32 0.0, %v114
    %116 = vmatmul.f32.gmra.mxu0 %v85
    %v117 = vpop.f32.mrf.mxu0
    %v118 = vadd.f32 0.0, %v117
    %119 = vmatmul.f32.gmra.mxu0 %v88
    %v120 = vpop.f32.mrf.mxu0
    %v121 = vadd.f32 0.0, %v120
    %122 = vdwg.mxu0
    %123 = vst [vmem:[#allocation2] sm:$0xff] %v112
    %124 = vst [vmem:[#allocation2 + $0x8] sm:$0xff] %v115
    %125 = vst [vmem:[#allocation2 + $0x10] sm:$0xff] %v118
    %126 = vst [vmem:[#allocation2 + $0x18] sm:$0xff] %v121
    // Predicated region
    $region18: #{tpu_custom_call.1} parent=1 // pred_check
      _
    $region19: #{tpu_custom_call.1} parent=1 // pred_check_branch
      %128 = sbr.rel (0) target = $region21
    $region20: #{tpu_custom_call.1} parent=1 // pred_region
      %130 = vsyncadd [#allocation3], 0
      %s131 = sshll.u32 [#allocation2], 4
      %s132 = int_to_ptr.vmem [resolvable:$true] %s131
      %s133 = sshll.u32 %s4, 4
      %s134 = int_to_ptr.hbm [resolvable:$true] %s133
      %139 = dma.vmem_to_hbm [thread:$0]  %s132, 512, %s134, [#allocation3], 128, 128, 8
    $region21: #{tpu_custom_call.1} parent=1 // pred_fallthru
      _
    // Predicated region
    $region22: #{tpu_custom_call.1} parent=1 // pred_check
      _
    $region23: #{tpu_custom_call.1} parent=1 // pred_check_branch
      %141 = sbr.rel (0) target = $region25
    $region24: #{tpu_custom_call.1} parent=1 // pred_region
      %143 = dma.done [#allocation3], 512
    $region25: #{tpu_custom_call.1} parent=1 // pred_fallthru
      _
    %144 = vsyncpa [#allocation3], 1

</llo_original>
